<compile_context>
chip_gen: v6e
topology: v6e:2x2x1
jax: 0.10.0
libtpu: 0.0.40
codegen_flags: <defaults>
</compile_context>

<pallas_src>
import functools

import jax
import jax.numpy as jnp
from jax import lax
from jax.experimental import pallas as pl
from jax.experimental.pallas import tpu as pltpu


def _yolo_loss_kernel(t_ref, pc_ref, px_ref, py_ref, pw_ref, ph_ref, loss_ref,
                      *, sx, sy, g2, noobj, coord):
    # t_ref : SMEM (5*B,) f32, per-image contiguous [x, y, w, h, label].
    # p*_ref: VMEM (B, G) prediction grids (native dtype, cast to f32 here).
    B, G = pc_ref.shape
    inv_sx = jnp.float32(1.0 / sx)     # constants: multiply, never divide
    inv_sy = jnp.float32(1.0 / sy)

    # ---- targets: SMEM scalars -> tiny (B, 1) sublane columns (no VMEM tile) ----
    row = lax.broadcasted_iota(jnp.int32, (B, 1), 0)

    def col(c):
        v = jnp.full((B, 1), t_ref[c], dtype=jnp.float32)
        for b in range(1, B):                       # short static select chain
            v = jnp.where(row == b, t_ref[b * 5 + c], v)
        return v

    x, y, w, h, label = col(0), col(1), col(2), col(3), col(4)

    # Target encodings.  x % sx / sx == x/sx - floor(x/sx) for non-negative x.
    qx = x * inv_sx
    qy = y * inv_sy
    tx = (qx - jnp.floor(qx) - 0.5) * label
    ty = (qy - jnp.floor(qy) - 0.5) * label
    stw = jnp.sqrt(w * inv_sx)                      # sqrt(tw)
    sth = jnp.sqrt(h * inv_sy)                      # sqrt(th)

    # Grid-cell index: reproduces `x.long() / sx` (truncate, then floor-divide);
    # valid for non-negative coordinates.
    x_idx = jnp.floor(x.astype(jnp.int32).astype(jnp.float32) * inv_sx).astype(jnp.int32)
    y_idx = jnp.floor(y.astype(jnp.int32).astype(jnp.float32) * inv_sy).astype(jnp.int32)
    cell = x_idx * g2 + y_idx                       # (B, 1) flattened object cell

    # ---- masks over the flattened grid (lane axis = G) ----
    lane = lax.broadcasted_iota(jnp.int32, (B, G), 1)
    sel = (lane == cell).astype(jnp.float32)        # 1 at the object cell
    # Reference zeroes tlocs[:, 0, 0]; equivalent to a per-image scalar factor.
    tlocs = sel * (cell != 0).astype(jnp.float32)   # (B, G)

    # Confidence residual: noobj weight everywhere, full weight at object cell.
    pc = pc_ref[...].astype(jnp.float32)
    conf_sq = (tlocs - pc) ** 2 * (jnp.float32(noobj) + sel * jnp.float32(1.0 - noobj))

    # ---- ONE fused lane reduction over a sublane-dense (5B, G) slab ----
    # (masked sums deliberately stay on VPU+XLU; shapes are far below MXU tiles)
    stacked = jnp.concatenate(
        [conf_sq,
         px_ref[...].astype(jnp.float32) * tlocs,
         py_ref[...].astype(jnp.float32) * tlocs,
         pw_ref[...].astype(jnp.float32) * tlocs,
         ph_ref[...].astype(jnp.float32) * tlocs],
        axis=0)                                      # (5B, G)
    sums = jnp.sum(stacked, axis=-1, keepdims=True)  # (5B, 1)

    conf_loss = jnp.sum(sums[0:B, :])
    pxs = sums[B:2 * B, :]
    pys = sums[2 * B:3 * B, :]
    pws = sums[3 * B:4 * B, :]
    phs = sums[4 * B:5 * B, :]

    coord_res = ((tx - pxs) ** 2 + (ty - pys) ** 2
                 + (stw - jnp.sqrt(pws)) ** 2 + (sth - jnp.sqrt(phs)) ** 2)  # (B, 1)

    loss_ref[0, 0] = conf_loss + jnp.float32(coord) * jnp.sum(coord_res)


def yolo_loss(preds, targets, img_size, noobj=0.5, coord=5.0):
    pc, px, py, pw, ph = preds
    x, y, w, h, label = targets
    B, G1, G2 = pc.shape
    sx = float(img_size) / G2
    sy = float(img_size) / G1
    G = G1 * G2

    # Free, contiguous reshapes only — no cross-array stack / extra HBM pass.
    pc2, px2, py2, pw2, ph2 = [a.reshape(B, G) for a in (pc, px, py, pw, ph)]

    # Tiny packed target block -> SMEM (flat to avoid 2-D SMEM padding).
    t = jnp.stack([jnp.asarray(v, jnp.float32).reshape(B)
                   for v in (x, y, w, h, label)], axis=-1).reshape(B * 5)

    kernel = functools.partial(_yolo_loss_kernel, sx=sx, sy=sy, g2=G2,
                               noobj=float(noobj), coord=float(coord))
    out = pl.pallas_call(
        kernel,
        out_shape=jax.ShapeDtypeStruct((1, 1), jnp.float32),
        in_specs=[pl.BlockSpec(memory_space=pltpu.MemorySpace.SMEM)]
                + [pl.BlockSpec(memory_space=pltpu.MemorySpace.VMEM)] * 5,
        out_specs=pl.BlockSpec(memory_space=pltpu.MemorySpace.SMEM),
    )(t, pc2, px2, py2, pw2, ph2)
    return out[0, 0]


def yolo_loss_ref(preds, targets, img_size, noobj=0.5, coord=5.0):
    """Pure-JAX reference mirroring the PyTorch forward."""
    pc, px, py, pw, ph = [jnp.asarray(p, jnp.float32) for p in preds]
    x, y, w, h, label = [jnp.asarray(t, jnp.float32) for t in targets]
    B, G1, G2 = pc.shape
    sx = float(img_size) / G2
    sy = float(img_size) / G1
    tx = (jnp.mod(x, sx) / sx - 0.5) * label
    ty = (jnp.mod(y, sy) / sy - 0.5) * label
    tw = w / sx
    th = h / sy
    x_idx = jnp.floor(x.astype(jnp.int32) / sx).astype(jnp.int32)
    y_idx = jnp.floor(y.astype(jnp.int32) / sy).astype(jnp.int32)
    tlocs = jnp.zeros_like(pc)
    tlocs = tlocs.at[jnp.arange(B), x_idx, y_idx].set(1.0)
    tlocs = tlocs.at[:, 0, 0].set(0.0)
    dif = (tlocs - pc) ** 2 * noobj
    dif = dif.at[jnp.arange(B), x_idx, y_idx].divide(noobj)
    loss = jnp.sum(dif)
    pxs = jnp.sum(px * tlocs, axis=(1, 2))
    pys = jnp.sum(py * tlocs, axis=(1, 2))
    pws = jnp.sum(pw * tlocs, axis=(1, 2))
    phs = jnp.sum(ph * tlocs, axis=(1, 2))
    loss += jnp.sum((tx - pxs) ** 2) * coord
    loss += jnp.sum((ty - pys) ** 2) * coord
    loss += jnp.sum((jnp.sqrt(tw) - jnp.sqrt(pws)) ** 2) * coord
    loss += jnp.sum((jnp.sqrt(th) - jnp.sqrt(phs)) ** 2) * coord
    return loss


if __name__ == "__main__":
    B, G1, G2 = 2, 8, 8
    img_size = 128  # -> sx = sy = 16

    key = jax.random.PRNGKey(0)
    kpc, kpx, kpy, kpw, kph, kx, ky, kw, kh = jax.random.split(key, 9)

    pc = jax.random.uniform(kpc, (B, G1, G2), jnp.float32)
    px = jax.random.uniform(kpx, (B, G1, G2), jnp.float32, -0.5, 0.5)
    py = jax.random.uniform(kpy, (B, G1, G2), jnp.float32, -0.5, 0.5)
    # keep width/height predictions positive (reference takes sqrt of masked sums)
    pw = jax.random.uniform(kpw, (B, G1, G2), jnp.float32, 0.05, 0.5)
    ph = jax.random.uniform(kph, (B, G1, G2), jnp.float32, 0.05, 0.5)

    x = jax.random.uniform(kx, (B,), jnp.float32, 0.0, float(img_size) - 1e-3)
    y = jax.random.uniform(ky, (B,), jnp.float32, 0.0, float(img_size) - 1e-3)
    w = jax.random.uniform(kw, (B,), jnp.float32, 4.0, 40.0)
    h = jax.random.uniform(kh, (B,), jnp.float32, 4.0, 40.0)
    label = jnp.array([1.0, 0.0], jnp.float32)

    preds = (pc, px, py, pw, ph)
    targets = (x, y, w, h, label)

    loss_kernel = jax.block_until_ready(yolo_loss(preds, targets, img_size))
    loss_reference = jax.block_until_ready(yolo_loss_ref(preds, targets, img_size))

    assert jnp.isfinite(loss_kernel), "kernel produced non-finite loss"
    assert jnp.allclose(loss_kernel, loss_reference, rtol=1e-5, atol=1e-5), (
        loss_kernel, loss_reference)
    print("KERNEL_OK")
</pallas_src>

<mosaic_0001>
module attributes {stable_mosaic.version = 11 : i64} {
  func.func @_yolo_loss_kernel(%arg0: memref<10xf32, #tpu.memory_space<smem>>, %arg1: memref<2x64xf32, #tpu.memory_space<vmem>>, %arg2: memref<2x64xf32, #tpu.memory_space<vmem>>, %arg3: memref<2x64xf32, #tpu.memory_space<vmem>>, %arg4: memref<2x64xf32, #tpu.memory_space<vmem>>, %arg5: memref<2x64xf32, #tpu.memory_space<vmem>>, %arg6: memref<1x1xf32, #tpu.memory_space<smem>>) attributes {dimension_semantics = [], scalar_prefetch = 0 : i64, scratch_operands = 0 : i64, tpu.core_type = #tpu.core_type<tc>} {
    %0 = tpu.iota {dimensions = array<i32: 0>} : vector<2x1xi32>
    %c0 = arith.constant 0 : index
    %1 = memref.load %arg0[%c0] : memref<10xf32, #tpu.memory_space<smem>>
    %2 = vector.broadcast %1 : f32 to vector<2x1xf32>
    %c1_i32 = arith.constant 1 : i32
    %3 = vector.broadcast %c1_i32 : i32 to vector<2x1xi32>
    %4 = arith.cmpi eq, %0, %3 : vector<2x1xi32>
    %c5 = arith.constant 5 : index
    %5 = memref.load %arg0[%c5] : memref<10xf32, #tpu.memory_space<smem>>
    %6 = vector.broadcast %5 : f32 to vector<2x1xf32>
    %7 = arith.select %4, %6, %2 : vector<2x1xi1>, vector<2x1xf32>
    %c1 = arith.constant 1 : index
    %8 = memref.load %arg0[%c1] : memref<10xf32, #tpu.memory_space<smem>>
    %9 = vector.broadcast %8 : f32 to vector<2x1xf32>
    %c1_i32_0 = arith.constant 1 : i32
    %10 = vector.broadcast %c1_i32_0 : i32 to vector<2x1xi32>
    %11 = arith.cmpi eq, %0, %10 : vector<2x1xi32>
    %c6 = arith.constant 6 : index
    %12 = memref.load %arg0[%c6] : memref<10xf32, #tpu.memory_space<smem>>
    %13 = vector.broadcast %12 : f32 to vector<2x1xf32>
    %14 = arith.select %11, %13, %9 : vector<2x1xi1>, vector<2x1xf32>
    %c2 = arith.constant 2 : index
    %15 = memref.load %arg0[%c2] : memref<10xf32, #tpu.memory_space<smem>>
    %16 = vector.broadcast %15 : f32 to vector<2x1xf32>
    %c1_i32_1 = arith.constant 1 : i32
    %17 = vector.broadcast %c1_i32_1 : i32 to vector<2x1xi32>
    %18 = arith.cmpi eq, %0, %17 : vector<2x1xi32>
    %c7 = arith.constant 7 : index
    %19 = memref.load %arg0[%c7] : memref<10xf32, #tpu.memory_space<smem>>
    %20 = vector.broadcast %19 : f32 to vector<2x1xf32>
    %21 = arith.select %18, %20, %16 : vector<2x1xi1>, vector<2x1xf32>
    %c3 = arith.constant 3 : index
    %22 = memref.load %arg0[%c3] : memref<10xf32, #tpu.memory_space<smem>>
    %23 = vector.broadcast %22 : f32 to vector<2x1xf32>
    %c1_i32_2 = arith.constant 1 : i32
    %24 = vector.broadcast %c1_i32_2 : i32 to vector<2x1xi32>
    %25 = arith.cmpi eq, %0, %24 : vector<2x1xi32>
    %c8 = arith.constant 8 : index
    %26 = memref.load %arg0[%c8] : memref<10xf32, #tpu.memory_space<smem>>
    %27 = vector.broadcast %26 : f32 to vector<2x1xf32>
    %28 = arith.select %25, %27, %23 : vector<2x1xi1>, vector<2x1xf32>
    %c4 = arith.constant 4 : index
    %29 = memref.load %arg0[%c4] : memref<10xf32, #tpu.memory_space<smem>>
    %30 = vector.broadcast %29 : f32 to vector<2x1xf32>
    %c1_i32_3 = arith.constant 1 : i32
    %31 = vector.broadcast %c1_i32_3 : i32 to vector<2x1xi32>
    %32 = arith.cmpi eq, %0, %31 : vector<2x1xi32>
    %c9 = arith.constant 9 : index
    %33 = memref.load %arg0[%c9] : memref<10xf32, #tpu.memory_space<smem>>
    %34 = vector.broadcast %33 : f32 to vector<2x1xf32>
    %35 = arith.select %32, %34, %30 : vector<2x1xi1>, vector<2x1xf32>
    %cst = arith.constant 6.250000e-02 : f32
    %36 = vector.broadcast %cst : f32 to vector<2x1xf32>
    %37 = arith.mulf %7, %36 : vector<2x1xf32>
    %cst_4 = arith.constant 6.250000e-02 : f32
    %38 = vector.broadcast %cst_4 : f32 to vector<2x1xf32>
    %39 = arith.mulf %14, %38 : vector<2x1xf32>
    %40 = math.floor %37 : vector<2x1xf32>
    %41 = arith.subf %37, %40 : vector<2x1xf32>
    %cst_5 = arith.constant 5.000000e-01 : f32
    %42 = vector.broadcast %cst_5 : f32 to vector<2x1xf32>
    %43 = arith.subf %41, %42 : vector<2x1xf32>
    %44 = arith.mulf %43, %35 : vector<2x1xf32>
    %45 = math.floor %39 : vector<2x1xf32>
    %46 = arith.subf %39, %45 : vector<2x1xf32>
    %cst_6 = arith.constant 5.000000e-01 : f32
    %47 = vector.broadcast %cst_6 : f32 to vector<2x1xf32>
    %48 = arith.subf %46, %47 : vector<2x1xf32>
    %49 = arith.mulf %48, %35 : vector<2x1xf32>
    %cst_7 = arith.constant 6.250000e-02 : f32
    %50 = vector.broadcast %cst_7 : f32 to vector<2x1xf32>
    %51 = arith.mulf %21, %50 : vector<2x1xf32>
    %52 = math.sqrt %51 : vector<2x1xf32>
    %cst_8 = arith.constant 6.250000e-02 : f32
    %53 = vector.broadcast %cst_8 : f32 to vector<2x1xf32>
    %54 = arith.mulf %28, %53 : vector<2x1xf32>
    %55 = math.sqrt %54 : vector<2x1xf32>
    %56 = arith.fptosi %7 : vector<2x1xf32> to vector<2x1xi32>
    %57 = arith.sitofp %56 : vector<2x1xi32> to vector<2x1xf32>
    %cst_9 = arith.constant 6.250000e-02 : f32
    %58 = vector.broadcast %cst_9 : f32 to vector<2x1xf32>
    %59 = arith.mulf %57, %58 : vector<2x1xf32>
    %60 = math.floor %59 : vector<2x1xf32>
    %61 = arith.fptosi %60 : vector<2x1xf32> to vector<2x1xi32>
    %62 = arith.fptosi %14 : vector<2x1xf32> to vector<2x1xi32>
    %63 = arith.sitofp %62 : vector<2x1xi32> to vector<2x1xf32>
    %cst_10 = arith.constant 6.250000e-02 : f32
    %64 = vector.broadcast %cst_10 : f32 to vector<2x1xf32>
    %65 = arith.mulf %63, %64 : vector<2x1xf32>
    %66 = math.floor %65 : vector<2x1xf32>
    %67 = arith.fptosi %66 : vector<2x1xf32> to vector<2x1xi32>
    %c8_i32 = arith.constant 8 : i32
    %68 = vector.broadcast %c8_i32 : i32 to vector<2x1xi32>
    %69 = arith.muli %61, %68 : vector<2x1xi32>
    %70 = arith.addi %69, %67 : vector<2x1xi32>
    %71 = tpu.iota {dimensions = array<i32: 1>} : vector<2x64xi32>
    %72 = vector.broadcast %70 : vector<2x1xi32> to vector<2x64xi32>
    %73 = arith.cmpi eq, %71, %72 : vector<2x64xi32>
    %74 = arith.extui %73 : vector<2x64xi1> to vector<2x64xi32>
    %75 = arith.sitofp %74 : vector<2x64xi32> to vector<2x64xf32>
    %c0_i32 = arith.constant 0 : i32
    %76 = vector.broadcast %c0_i32 : i32 to vector<2x1xi32>
    %77 = arith.cmpi ne, %70, %76 : vector<2x1xi32>
    %78 = arith.extui %77 : vector<2x1xi1> to vector<2x1xi32>
    %79 = arith.sitofp %78 : vector<2x1xi32> to vector<2x1xf32>
    %80 = vector.broadcast %79 : vector<2x1xf32> to vector<2x64xf32>
    %81 = arith.mulf %75, %80 : vector<2x64xf32>
    %c0_11 = arith.constant 0 : index
    %c0_12 = arith.constant 0 : index
    %82 = vector.load %arg1[%c0_11, %c0_12] : memref<2x64xf32, #tpu.memory_space<vmem>>, vector<2x64xf32>
    %83 = arith.subf %81, %82 : vector<2x64xf32>
    %84 = arith.mulf %83, %83 : vector<2x64xf32>
    %cst_13 = arith.constant 5.000000e-01 : f32
    %85 = vector.broadcast %cst_13 : f32 to vector<2x64xf32>
    %86 = arith.mulf %75, %85 : vector<2x64xf32>
    %cst_14 = arith.constant 5.000000e-01 : f32
    %87 = vector.broadcast %cst_14 : f32 to vector<2x64xf32>
    %88 = arith.addf %87, %86 : vector<2x64xf32>
    %89 = arith.mulf %84, %88 : vector<2x64xf32>
    %c0_15 = arith.constant 0 : index
    %c0_16 = arith.constant 0 : index
    %90 = vector.load %arg2[%c0_15, %c0_16] : memref<2x64xf32, #tpu.memory_space<vmem>>, vector<2x64xf32>
    %91 = arith.mulf %90, %81 : vector<2x64xf32>
    %c0_17 = arith.constant 0 : index
    %c0_18 = arith.constant 0 : index
    %92 = vector.load %arg3[%c0_17, %c0_18] : memref<2x64xf32, #tpu.memory_space<vmem>>, vector<2x64xf32>
    %93 = arith.mulf %92, %81 : vector<2x64xf32>
    %c0_19 = arith.constant 0 : index
    %c0_20 = arith.constant 0 : index
    %94 = vector.load %arg4[%c0_19, %c0_20] : memref<2x64xf32, #tpu.memory_space<vmem>>, vector<2x64xf32>
    %95 = arith.mulf %94, %81 : vector<2x64xf32>
    %c0_21 = arith.constant 0 : index
    %c0_22 = arith.constant 0 : index
    %96 = vector.load %arg5[%c0_21, %c0_22] : memref<2x64xf32, #tpu.memory_space<vmem>>, vector<2x64xf32>
    %97 = arith.mulf %96, %81 : vector<2x64xf32>
    %98 = tpu.concatenate %89, %91, %93, %95, %97 in 0 : vector<2x64xf32>, vector<2x64xf32>, vector<2x64xf32>, vector<2x64xf32>, vector<2x64xf32> -> vector<10x64xf32>
    %cst_23 = arith.constant dense<0.000000e+00> : vector<10xf32>
    %99 = vector.multi_reduction <add>, %98, %cst_23 [1] : vector<10x64xf32> to vector<10xf32>
    %100 = vector.shape_cast %99 : vector<10xf32> to vector<10x1xf32>
    %101 = vector.extract_strided_slice %100 {offsets = [0, 0], sizes = [2, 1], strides = [1, 1]} : vector<10x1xf32> to vector<2x1xf32>
    %102 = vector.shape_cast %101 : vector<2x1xf32> to vector<1x2x1xf32>
    %cst_24 = arith.constant dense<0.000000e+00> : vector<1xf32>
    %103 = vector.multi_reduction <add>, %102, %cst_24 [1, 2] : vector<1x2x1xf32> to vector<1xf32>
    %104 = vector.shape_cast %103 : vector<1xf32> to vector<1x1x1xf32>
    %105 = vector.extract %104[0, 0, 0] : f32 from vector<1x1x1xf32>
    %106 = vector.extract_strided_slice %100 {offsets = [2, 0], sizes = [2, 1], strides = [1, 1]} : vector<10x1xf32> to vector<2x1xf32>
    %107 = vector.extract_strided_slice %100 {offsets = [4, 0], sizes = [2, 1], strides = [1, 1]} : vector<10x1xf32> to vector<2x1xf32>
    %108 = vector.extract_strided_slice %100 {offsets = [6, 0], sizes = [2, 1], strides = [1, 1]} : vector<10x1xf32> to vector<2x1xf32>
    %109 = vector.extract_strided_slice %100 {offsets = [8, 0], sizes = [2, 1], strides = [1, 1]} : vector<10x1xf32> to vector<2x1xf32>
    %110 = arith.subf %44, %106 : vector<2x1xf32>
    %111 = arith.mulf %110, %110 : vector<2x1xf32>
    %112 = arith.subf %49, %107 : vector<2x1xf32>
    %113 = arith.mulf %112, %112 : vector<2x1xf32>
    %114 = arith.addf %111, %113 : vector<2x1xf32>
    %115 = math.sqrt %108 : vector<2x1xf32>
    %116 = arith.subf %52, %115 : vector<2x1xf32>
    %117 = arith.mulf %116, %116 : vector<2x1xf32>
    %118 = arith.addf %114, %117 : vector<2x1xf32>
    %119 = math.sqrt %109 : vector<2x1xf32>
    %120 = arith.subf %55, %119 : vector<2x1xf32>
    %121 = arith.mulf %120, %120 : vector<2x1xf32>
    %122 = arith.addf %118, %121 : vector<2x1xf32>
    %123 = vector.shape_cast %122 : vector<2x1xf32> to vector<1x2x1xf32>
    %cst_25 = arith.constant dense<0.000000e+00> : vector<1xf32>
    %124 = vector.multi_reduction <add>, %123, %cst_25 [1, 2] : vector<1x2x1xf32> to vector<1xf32>
    %125 = vector.shape_cast %124 : vector<1xf32> to vector<1x1x1xf32>
    %126 = vector.extract %125[0, 0, 0] : f32 from vector<1x1x1xf32>
    %cst_26 = arith.constant 5.000000e+00 : f32
    %127 = arith.mulf %cst_26, %126 : f32
    %128 = arith.addf %105, %127 : f32
    %c0_27 = arith.constant 0 : index
    %c0_28 = arith.constant 0 : index
    %129 = memref.load %arg6[%c0_27, %c0_28] : memref<1x1xf32, #tpu.memory_space<smem>>
    memref.store %128, %arg6[%c0_27, %c0_28] : memref<1x1xf32, #tpu.memory_space<smem>>
    return
  }
}

</mosaic_0001>

<llo_original>
// kernel: tpu_custom_call.1
$region0: #{tpu_custom_call.1}
  #allocation0 [shape = 'u32[]', space=smem, size = 0x4, offset = 0x4, fixed_abs, tag = 'smem constant byte address 0x4 - core index']
  #allocation1 [shape = 'u32[144,128]{1,0:T(1,128)}', space=vmem, size = 0x12000, scoped, tag = 'internal scratch']
  %s0 = inlined_call_operand.hbm [shape: f32[10], index: 0, kind: input, shape index: {}]
  %s1 = inlined_call_operand.hbm [shape: f32[2,64], index: 1, kind: input, shape index: {}]
  %s2 = inlined_call_operand.vmem [shape: f32[2,64], index: 2, kind: input, shape index: {}]
  %s3 = inlined_call_operand.vmem [shape: f32[2,64], index: 3, kind: input, shape index: {}]
  %s4 = inlined_call_operand.vmem [shape: f32[2,64], index: 4, kind: input, shape index: {}]
  %s5 = inlined_call_operand.vmem [shape: f32[2,64], index: 5, kind: input, shape index: {}]
  %s6 = inlined_call_operand.hbm [shape: f32[1,1], index: 6, kind: output, shape index: {}]
  %s7 = sld [smem:[#allocation0]]
  $region42: #{tpu_custom_call.1} parent=0
    _
  %s9 = ssub.s32 1, %s7
  %s10 = scalar_select 0, %s9, %s7
  $region1: #{tpu_custom_call.1} parent=0
    #allocation2 [shape = 'u8[512]{0}', space=smem, size = 0x200, scoped, tag = 'input window, operand 0, single buffered']
    #allocation3 [shape = 's32[1]{0}', space=sflag, size = 0x4, scoped, tag = 'scoped memory for tpu_custom_call.1']
    #allocation4 [shape = 's32[1]{0}', space=sflag, size = 0x4, scoped, tag = 'scoped memory for tpu_custom_call.1']
    #allocation5 [shape = 's32[1]{0}', space=sflag, size = 0x4, scoped, tag = 'scoped memory for tpu_custom_call.1']
    #allocation6 [shape = 'u8[1024]{0}', space=vmem, size = 0x400, scoped, tag = 'input window, operand 1, single buffered']
    #allocation7 [shape = 'u8[512]{0}', space=smem, size = 0x200, scoped, tag = 'output window, operand 0, single buffered']
    %11 = vsyncpa [#allocation4], 0
    %12 = vsyncpa [#allocation3], 0
    %13 = vsyncpa [#allocation5], 0
    // Predicated region
    $region2: #{tpu_custom_call.1} parent=1 // pred_check
      _
    $region3: #{tpu_custom_call.1} parent=1 // pred_check_branch
      %15 = sbr.rel (0) target = $region5
    $region4: #{tpu_custom_call.1} parent=1 // pred_region
      %s17 = ssub.s32 16, 16
      %18 = vsyncadd [#allocation4], %s17
      %21 = dma.hbm_to_smem %s0, 16, [#allocation2], [#allocation4]
    $region5: #{tpu_custom_call.1} parent=1 // pred_fallthru
      _
    // Predicated region
    $region6: #{tpu_custom_call.1} parent=1 // pred_check
      _
    $region7: #{tpu_custom_call.1} parent=1 // pred_check_branch
      %23 = sbr.rel (0) target = $region9
    $region8: #{tpu_custom_call.1} parent=1 // pred_region
      %s25 = ssub.s32 32, 32
      %26 = vsyncadd [#allocation3], %s25
      %s28 = sshll.u32 [#allocation6], 4
      %s29 = int_to_ptr.vmem [resolvable:$true] %s28
      %31 = dma.hbm_to_vmem [thread:$0]  %s1, 32, %s29, [#allocation3]
    $region9: #{tpu_custom_call.1} parent=1 // pred_fallthru
      _
    // Predicated region
    $region10: #{tpu_custom_call.1} parent=1 // pred_check
      _
    $region11: #{tpu_custom_call.1} parent=1 // pred_check_branch
      %33 = sbr.rel (0) target = $region13
    $region12: #{tpu_custom_call.1} parent=1 // pred_region
      _
    $region13: #{tpu_custom_call.1} parent=1 // pred_fallthru
      _
    // Predicated region
    $region14: #{tpu_custom_call.1} parent=1 // pred_check
      _
    $region15: #{tpu_custom_call.1} parent=1 // pred_check_branch
      %35 = sbr.rel (0) target = $region17
    $region16: #{tpu_custom_call.1} parent=1 // pred_region
      _
    $region17: #{tpu_custom_call.1} parent=1 // pred_fallthru
      _
    // Predicated region
    $region18: #{tpu_custom_call.1} parent=1 // pred_check
      _
    $region19: #{tpu_custom_call.1} parent=1 // pred_check_branch
      %37 = sbr.rel (0) target = $region21
    $region20: #{tpu_custom_call.1} parent=1 // pred_region
      _
    $region21: #{tpu_custom_call.1} parent=1 // pred_fallthru
      _
    // Predicated region
    $region22: #{tpu_custom_call.1} parent=1 // pred_check
      _
    $region23: #{tpu_custom_call.1} parent=1 // pred_check_branch
      %39 = sbr.rel (0) target = $region25
    $region24: #{tpu_custom_call.1} parent=1 // pred_region
      _
    $region25: #{tpu_custom_call.1} parent=1 // pred_fallthru
      _
    // Predicated region
    $region26: #{tpu_custom_call.1} parent=1 // pred_check
      _
    $region27: #{tpu_custom_call.1} parent=1 // pred_check_branch
      %41 = sbr.rel (0) target = $region29
    $region28: #{tpu_custom_call.1} parent=1 // pred_region
      %42 = dma.done [#allocation4], 16
    $region29: #{tpu_custom_call.1} parent=1 // pred_fallthru
      _
    // Predicated region
    $region30: #{tpu_custom_call.1} parent=1 // pred_check
      _
    $region31: #{tpu_custom_call.1} parent=1 // pred_check_branch
      %44 = sbr.rel (0) target = $region33
    $region32: #{tpu_custom_call.1} parent=1 // pred_region
      %45 = dma.done [#allocation3], 32
    $region33: #{tpu_custom_call.1} parent=1 // pred_fallthru
      _
    %46 = sfence
    %v47 = vlaneseq
    %v48 = vshrl.u32 %v47, 7
    %s49 = sld [smem:[#allocation2]]
    %v50 = vstv %s49
    %vm51 = vcmp.eq.s32.totalorder %v48, 1
    %s52 = sld [smem:[#allocation2 + $0x5]]
    %v53 = vstv %s52
    %v54 = vsel %vm51, %v53, %v50
    %s55 = sld [smem:[#allocation2 + $0x1]]
    %v56 = vstv %s55
    %s57 = sld [smem:[#allocation2 + $0x6]]
    %v58 = vstv %s57
    %v59 = vsel %vm51, %v58, %v56
    %s60 = sld [smem:[#allocation2 + $0x2]]
    %v61 = vstv %s60
    %s62 = sld [smem:[#allocation2 + $0x7]]
    %v63 = vstv %s62
    %v64 = vsel %vm51, %v63, %v61
    %s65 = sld [smem:[#allocation2 + $0x3]]
    %v66 = vstv %s65
    %s67 = sld [smem:[#allocation2 + $0x8]]
    %v68 = vstv %s67
    %v69 = vsel %vm51, %v68, %v66
    %s70 = sld [smem:[#allocation2 + $0x4]]
    %v71 = vstv %s70
    %s72 = sld [smem:[#allocation2 + $0x9]]
    %v73 = vstv %s72
    %v74 = vsel %vm51, %v73, %v71
    %v75 = vmul.f32 %v54, 0.0625
    %v76 = vmul.f32 %v59, 0.0625
    %v77 = vfloor.f32 %v75
    %v78 = vsub.f32 %v75, %v77
    %v79 = vsub.f32 %v78, 0.5
    %v80 = vmul.f32 %v79, %v74
    %v81 = vfloor.f32 %v76
    %v82 = vsub.f32 %v76, %v81
    %v83 = vsub.f32 %v82, 0.5
    %v84 = vmul.f32 %v83, %v74
    %v85 = vmul.f32 %v64, 0.0625
    %v86 = vrsqrt.pop %v85
    %v87 = vmul.f32 %v85, %v86
    %vm88 = vcmp.eq.f32.partialorder %v85, inf
    %v89 = vsel %vm88, %v85, %v87
    %vm90 = vcmp.eq.f32.partialorder %v85, 0.0
    %v91 = vand.u32 %v85, 2147483648
    %v92 = vsel %vm90, %v91, %v89
    %v93 = vmul.f32 %v69, 0.0625
    %v94 = vrsqrt.pop %v93
    %v95 = vmul.f32 %v93, %v94
    %vm96 = vcmp.eq.f32.partialorder %v93, inf
    %v97 = vsel %vm96, %v93, %v95
    %vm98 = vcmp.eq.f32.partialorder %v93, 0.0
    %v99 = vand.u32 %v93, 2147483648
    %v100 = vsel %vm98, %v99, %v97
    %v101 = vcvt.f32.s32.to.zero.pseudo %v54
    %v102 = vcvt.s32.f32 %v101
    %v103 = vmul.f32 %v102, 0.0625
    %v104 = vfloor.f32 %v103
    %v105 = vcvt.f32.s32.to.zero.pseudo %v104
    %v106 = vcvt.f32.s32.to.zero.pseudo %v59
    %v107 = vcvt.s32.f32 %v106
    %v108 = vmul.f32 %v107, 0.0625
    %v109 = vfloor.f32 %v108
    %v110 = vcvt.f32.s32.to.zero.pseudo %v109
    %v111 = vmul.u32 %v105, 8
    %v112 = vadd.s32 %v111, %v110
    %v113 = vlaneseq
    %v114 = vand.u32 %v113, 127
    %vm115 = vcmp.eq.s32.totalorder %v114, %v112
    %v116 = vsel %vm115, 1, 0
    %v117 = vcvt.s32.f32 %v116
    %vm118 = vcmp.ne.s32.totalorder %v112, 0
    %v119 = vsel %vm118, 1, 0
    %v120 = vcvt.s32.f32 %v119
    %v121 = vmul.f32 %v117, %v120
    %v122 = vld [vmem:[#allocation6] sm:$0x3]
    %v123 = vsub.f32 %v121, %v122
    %v124 = vmul.f32 %v123, %v123
    %v125 = vmul.f32 %v117, 0.5
    %v126 = vadd.f32 %v125, 0.5
    %v127 = vmul.f32 %v124, %v126
    %v128 = vld [vmem:[%s2] sm:$0x3]
    %v129 = vmul.f32 %v128, %v121
    %v130 = vld [vmem:[%s3] sm:$0x3]
    %v131 = vmul.f32 %v130, %v121
    %v132 = vld [vmem:[%s4] sm:$0x3]
    %v133 = vmul.f32 %v132, %v121
    %v134 = vld [vmem:[%s5] sm:$0x3]
    %v135 = vmul.f32 %v134, %v121
    %v137 = vrot.slane %v129, 6
    %v140 = vrot.slane %v131, 4
    %v143 = vrot.slane %v133, 2
    %vm145 = vcmask 1041408
    %v146 = vsel %vm145, %v127, %v137
    %vm147 = vcmask 1043456
    %v148 = vsel %vm147, %v146, %v140
    %vm149 = vcmask 1045504
    %v150 = vsel %vm149, %v148, %v143
    %vm151 = vcmask 523264
    %v152 = vsel %vm151, %v150, 0.0
    %153 = vadd.xlane.f32.xlu0 %v152
    %v154 = vpop.xlane.xlu0 %153
    %vm155 = vcmask 517120
    %v156 = vsel %vm155, %v135, 0.0
    %157 = vadd.xlane.f32.xlu0 %v156
    %v158 = vpop.xlane.xlu0 %157
    %vm159 = vcmask 1024
    %v160 = vsel %vm159, %v154, 0.0
    %161 = vadd.xlane.f32.xlu0 %v160
    %v162 = vpop.xlane.xlu0 %161
    %v163 = vrot.slane %v162, 4
    %v164 = vadd.f32 %v162, %v163
    %v165 = vrot.slane %v164, 2
    %v166 = vadd.f32 %v164, %v165
    %v167 = vrot.slane %v166, 1
    %v168 = vadd.f32 %v166, %v167
    %s169 = vtos %v168
    %v171 = vrot.slane %v154, 2
    %v173 = vsub.f32 %v80, %v171
    %v174 = vmul.f32 %v173, %v173
    %v175 = vrot.slane %v154, 4
    %v177 = vsub.f32 %v84, %v175
    %v178 = vmul.f32 %v177, %v177
    %v179 = vadd.f32 %v174, %v178
    %v180 = vrsqrt.pop %v154
    %v181 = vmul.f32 %v154, %v180
    %vm182 = vcmp.eq.f32.partialorder %v154, inf
    %v183 = vsel %vm182, %v154, %v181
    %vm184 = vcmp.eq.f32.partialorder %v154, 0.0
    %v185 = vand.u32 %v154, 2147483648
    %v186 = vsel %vm184, %v185, %v183
    %v188 = vrot.slane %v186, 6
    %v190 = vsub.f32 %v92, %v188
    %v191 = vmul.f32 %v190, %v190
    %v192 = vadd.f32 %v179, %v191
    %v193 = vrsqrt.pop %v158
    %v194 = vmul.f32 %v158, %v193
    %vm195 = vcmp.eq.f32.partialorder %v158, inf
    %v196 = vsel %vm195, %v158, %v194
    %vm197 = vcmp.eq.f32.partialorder %v158, 0.0
    %v198 = vand.u32 %v158, 2147483648
    %v199 = vsel %vm197, %v198, %v196
    %v200 = vsub.f32 %v100, %v199
    %v201 = vmul.f32 %v200, %v200
    %v202 = vadd.f32 %v192, %v201
    %v203 = vsel %vm159, %v202, 0.0
    %204 = vadd.xlane.f32.xlu0 %v203
    %v205 = vpop.xlane.xlu0 %204
    %v206 = vrot.slane %v205, 4
    %v207 = vadd.f32 %v205, %v206
    %v208 = vrot.slane %v207, 2
    %v209 = vadd.f32 %v207, %v208
    %v210 = vrot.slane %v209, 1
    %v211 = vadd.f32 %v209, %v210
    %s212 = vtos %v211
    %s213 = smul.f32 %s212, 5.0
    %s214 = sadd.f32 %s169, %s213
    %s215 = scalar_lea.smem [#allocation7], 0
    %216 = sst [smem:[%s215]] %s214
    // Predicated region
    $region34: #{tpu_custom_call.1} parent=1 // pred_check
      _
    $region35: #{tpu_custom_call.1} parent=1 // pred_check_branch
      %218 = sbr.rel (0) target = $region37
    $region36: #{tpu_custom_call.1} parent=1 // pred_region
      %s220 = ssub.s32 16, 16
      %221 = vsyncadd [#allocation5], %s220
      %224 = dma.smem_to_hbm [#allocation7], 16, %s6, [#allocation5]
    $region37: #{tpu_custom_call.1} parent=1 // pred_fallthru
      _
    // Predicated region
    $region38: #{tpu_custom_call.1} parent=1 // pred_check
      _
    $region39: #{tpu_custom_call.1} parent=1 // pred_check_branch
      %226 = sbr.rel (0) target = $region41
    $region40: #{tpu_custom_call.1} parent=1 // pred_region
      %227 = dma.done [#allocation5], 16
    $region41: #{tpu_custom_call.1} parent=1 // pred_fallthru
      _
    %228 = sfence
    %229 = vsyncpa [#allocation3], 1
    %230 = vsyncpa [#allocation4], 1
    %231 = vsyncpa [#allocation5], 1

</llo_original>
